<compile_context>
chip_gen: v7x
topology: tpu7x:2x2x1
jax: 0.10.0
libtpu: 0.0.40
codegen_flags: <defaults>
</compile_context>

<pallas_src>
import functools

import jax
import jax.numpy as jnp
from jax import lax
from jax.experimental import pallas as pl
from jax.experimental.pallas import tpu as pltpu

LANES = 128
SUBLANES = 8
MAX_TILE_BYTES = 2 * 1024 * 1024      # per-input VMEM tile (x2 inputs, x2 buffers)
VMEM_LIMIT_BYTES = 48 * 1024 * 1024   # explicit scoped-VMEM limit (fits v5e..v7x)
MIN_KERNEL_ELEMS = 1024               # below this, pallas_call overhead dominates


def _round_up(x, n):
    return (x + n - 1) // n * n


def _sublane_multiple(dtype):
    # Second-to-last block dim must be a multiple of 8 (f32) / 16 (bf16) / 32 (i8).
    return max(SUBLANES, 32 // jnp.dtype(dtype).itemsize)


def _num_tensorcores():
    """TensorCores per JAX device: 2 on megacore (v4/v5p) and v7x, else 1."""
    try:
        kind = jax.devices()[0].device_kind.lower()
    except Exception:
        return 1
    if "lite" in kind or "v5e" in kind or "v6" in kind:
        return 1
    if "v4" in kind or "v5" in kind or "v7" in kind:
        return 2
    return 1


def _focal_terms(p, t, *, alpha, gamma, binary_targets):
    """Elementwise focal-loss terms in f32, PyTorch BCE semantics (-100 log clamp)."""
    p = p.astype(jnp.float32)
    t = t.astype(jnp.float32)
    if binary_targets:
        # t in {0,1}: one EUP transcendental per element instead of three.
        p_t = jnp.where(t > 0.5, p, 1.0 - p)
        bce = -jnp.maximum(jnp.log(p_t), -100.0)
        # pt = exp(-bce) == max(p_t, e^-100); e^-100 ~ 3.7e-44 is far below the
        # f32 resolution of (1 - pt), so p_t is exact for the focal factor.
        pt = p_t
    else:
        # Clamp BEFORE the (1-t)/(t) multiply -- required so p=1,t=1 padding and
        # exact-0/1 probabilities stay finite (PyTorch ordering).
        log_p = jnp.maximum(jnp.log(p), -100.0)
        log_1mp = jnp.maximum(jnp.log1p(-p), -100.0)
        bce = -(t * log_p + (1.0 - t) * log_1mp)
        pt = jnp.exp(-bce)
    one_minus_pt = 1.0 - pt
    if float(gamma).is_integer() and gamma >= 0:
        focal = lax.integer_pow(one_minus_pt, int(gamma))   # VPU muls, no EUP pow
    else:
        focal = one_minus_pt ** gamma
    f = focal * bce
    if alpha != 1.0:   # compile-time skip of the multiply when alpha == 1
        f = alpha * f
    return f


def _focal_loss_kernel(x_ref, t_ref, acc_ref, *, alpha, gamma, binary_targets,
                       valid_rows, tile_rows, steps_per_core, needs_mask):
    c = pl.program_id(0)
    i = pl.program_id(1)

    @pl.when(i == 0)
    def _():
        acc_ref[...] = jnp.zeros_like(acc_ref)

    p = x_ref[...].astype(jnp.float32)
    t = t_ref[...].astype(jnp.float32)

    if needs_mask:
        # Ragged / duplicated boundary blocks: force loss-neutral rows
        # (p=1, t=1 -> BCE=0, focal factor 0) BEFORE the logs so garbage
        # (0 / NaN) in the out-of-bounds VMEM region cannot poison the sum.
        row0 = (c * steps_per_core + i) * tile_rows
        local_row = lax.broadcasted_iota(jnp.int32, p.shape, 0)
        valid = (row0 + local_row) < valid_rows
        p = jnp.where(valid, p, 1.0)
        t = jnp.where(valid, t, 1.0)

    f = _focal_terms(p, t, alpha=alpha, gamma=gamma, binary_targets=binary_targets)

    # Fold (tile_rows, 128) -> (8, 128) with vreg-wise VPU adds; the cross-lane
    # reduce and the mean happen once in the wrapper epilogue.
    acc_ref[0] += f.reshape(tile_rows // SUBLANES, SUBLANES, LANES).sum(axis=0)


def focal_loss(inputs, targets, *, alpha=1.0, gamma=2.0, binary_targets=False):
    """Focal loss with logits=False, reduce=True (the module's default config).

    binary_targets=True enables a fast path that is only valid when every
    target is exactly 0 or 1 (one transcendental/element, bf16 targets).
    """
    assert inputs.shape == targets.shape
    alpha = float(alpha)
    gamma = float(gamma)
    total = int(inputs.size)

    flat_x = inputs.reshape(-1)          # free reshape of a contiguous array
    flat_t = targets.reshape(-1)
    if binary_targets and flat_t.dtype.itemsize > 2:
        # {0,1} are exact in bf16; halves the target HBM bytes read by the kernel.
        flat_t = flat_t.astype(jnp.bfloat16)

    sub = max(_sublane_multiple(flat_x.dtype), _sublane_multiple(flat_t.dtype))
    rows = total // LANES                # full 128-lane rows
    main = rows * LANES

    # Tiny inputs: pallas_call launch overhead dominates -> pure JAX.
    if total < MIN_KERNEL_ELEMS or rows < sub:
        f = _focal_terms(flat_x, flat_t, alpha=alpha, gamma=gamma,
                         binary_targets=binary_targets)
        return jnp.sum(f) / jnp.float32(total)

    if main == total:
        x2d = flat_x.reshape(rows, LANES)            # zero-copy, lane-dense
        t2d = flat_t.reshape(rows, LANES)
    else:
        # TODO(synk): this prefix slice may copy `main` elements for huge
        # non-128-divisible inputs; a manual-DMA ragged-lane kernel would avoid it.
        x2d = flat_x[:main].reshape(rows, LANES)
        t2d = flat_t[:main].reshape(rows, LANES)

    # --- Tiling -------------------------------------------------------------
    num_cores = _num_tensorcores()
    if rows < num_cores * sub:
        num_cores = 1

    max_itemsize = max(x2d.dtype.itemsize, t2d.dtype.itemsize)
    max_tile_rows = max(sub, (MAX_TILE_BYTES // (LANES * max_itemsize)) // sub * sub)

    tile_rows = min(max_tile_rows, _round_up(pl.cdiv(rows, num_cores), sub))
    if tile_rows > rows:                 # keep the block inside the array
        tile_rows = max(sub, (rows // sub) * sub)

    total_blocks = pl.cdiv(rows, tile_rows)
    steps_per_core = pl.cdiv(total_blocks, num_cores)
    needs_mask = num_cores * steps_per_core * tile_rows != rows
    last_block = total_blocks - 1

    kernel = functools.partial(
        _focal_loss_kernel, alpha=alpha, gamma=gamma,
        binary_targets=binary_targets, valid_rows=rows, tile_rows=tile_rows,
        steps_per_core=steps_per_core, needs_mask=needs_mask)

    def in_map(c, i):
        # Clamp so the (at most one) overshooting block index stays in bounds;
        # the kernel's row mask zeroes its contribution.
        return (jnp.minimum(c * steps_per_core + i, last_block), 0)

    # TODO(synk): on v7x, verify with a profile that the leading "parallel" axis
    # really shards across both TensorCores; otherwise switch to CORE_PARALLEL.
    partials = pl.pallas_call(
        kernel,
        out_shape=jax.ShapeDtypeStruct((num_cores, SUBLANES, LANES), jnp.float32),
        grid_spec=pltpu.PrefetchScalarGridSpec(
            num_scalar_prefetch=0,
            grid=(num_cores, steps_per_core),
            in_specs=[pl.BlockSpec((tile_rows, LANES), in_map),
                      pl.BlockSpec((tile_rows, LANES), in_map)],
            out_specs=pl.BlockSpec((1, SUBLANES, LANES), lambda c, i: (c, 0, 0)),
        ),
        compiler_params=pltpu.CompilerParams(
            dimension_semantics=("parallel", "arbitrary"),
            vmem_limit_bytes=VMEM_LIMIT_BYTES),
    )(x2d, t2d)

    loss_sum = jnp.sum(partials)

    if main != total:
        # Sub-128-element lane remainder: tiny (<128 elems) pure-JAX epilogue.
        loss_sum = loss_sum + jnp.sum(
            _focal_terms(flat_x[main:], flat_t[main:], alpha=alpha, gamma=gamma,
                         binary_targets=binary_targets))

    return loss_sum / jnp.float32(total)


def focal_loss_ref(inputs, targets, *, alpha=1.0, gamma=2.0):
    p = inputs.astype(jnp.float32)
    t = targets.astype(jnp.float32)
    bce = -(t * jnp.maximum(jnp.log(p), -100.0)
            + (1.0 - t) * jnp.maximum(jnp.log1p(-p), -100.0))
    pt = jnp.exp(-bce)
    return jnp.mean(alpha * (1.0 - pt) ** gamma * bce)


if __name__ == "__main__":
    key = jax.random.PRNGKey(0)
    k1, k2, k3, k4 = jax.random.split(key, 4)

    # Probabilities (logits=False path); {0,1} float targets.
    x = jax.nn.sigmoid(jax.random.normal(k1, (2, 4, 16, 16), jnp.float32))
    t = jax.random.bernoulli(k2, 0.5, (2, 4, 16, 16)).astype(jnp.float32)
    ref = jax.block_until_ready(focal_loss_ref(x, t))

    out = jax.block_until_ready(focal_loss(x, t))
    assert jnp.allclose(out, ref, rtol=1e-5, atol=1e-6), (out, ref)

    # Binary-target fast path (1 transcendental/element, bf16 targets).
    out_b = jax.block_until_ready(focal_loss(x, t, binary_targets=True))
    assert jnp.allclose(out_b, ref, rtol=1e-5, atol=1e-6), (out_b, ref)

    # bf16 probabilities (kernel upcasts on load; 16-row sublane multiple).
    x_bf = x.astype(jnp.bfloat16)
    ref_bf = jax.block_until_ready(focal_loss_ref(x_bf, t))
    out_bf = jax.block_until_ready(focal_loss(x_bf, t))
    assert jnp.allclose(out_bf, ref_bf, rtol=1e-5, atol=1e-6), (out_bf, ref_bf)

    # Non-multiple-of-128 total: ragged row blocks + in-kernel mask + tail epilogue.
    x2 = jax.nn.sigmoid(jax.random.normal(k3, (3, 5, 17, 19), jnp.float32))
    t2 = jax.random.bernoulli(k4, 0.5, (3, 5, 17, 19)).astype(jnp.float32)
    ref2 = jax.block_until_ready(focal_loss_ref(x2, t2))
    out2 = jax.block_until_ready(focal_loss(x2, t2))
    assert jnp.allclose(out2, ref2, rtol=1e-5, atol=1e-6), (out2, ref2)

    # TODO(synk): logits=True (binary_cross_entropy_with_logits) and reduce=False
    # (elementwise output) configs of the module are not kernelized here.
    print("KERNEL_OK")
</pallas_src>

<mosaic_0001>
module attributes {stable_mosaic.version = 11 : i64} {
  func.func @_focal_loss_kernel(%arg0: i32, %arg1: i32, %arg2: memref<16x128xf32, #tpu.memory_space<vmem>>, %arg3: memref<16x128xf32, #tpu.memory_space<vmem>>, %arg4: memref<1x8x128xf32, #tpu.memory_space<vmem>>) attributes {dimension_semantics = [#tpu.dimension_semantics<parallel>, #tpu.dimension_semantics<arbitrary>], iteration_bounds = array<i64: 1, 1>, scalar_prefetch = 0 : i64, scratch_operands = 0 : i64, tpu.core_type = #tpu.core_type<tc>, window_params = [{transform_indices = @transform_0, window_bounds = array<i64: 16, 128>}, {transform_indices = @transform_1, window_bounds = array<i64: 16, 128>}, {transform_indices = @transform_2, window_bounds = array<i64: 1, 8, 128>}]} {
    %c0_i32 = arith.constant 0 : i32
    %0 = arith.cmpi eq, %arg1, %c0_i32 : i32
    %1 = arith.extui %0 : i1 to i32
    %c0_i32_0 = arith.constant 0 : i32
    %2 = arith.cmpi ne, %1, %c0_i32_0 : i32
    scf.if %2 {
      %cst_17 = arith.constant 0.000000e+00 : f32
      %35 = vector.broadcast %cst_17 : f32 to vector<1x8x128xf32>
      %c0_18 = arith.constant 0 : index
      %c0_19 = arith.constant 0 : index
      %c0_20 = arith.constant 0 : index
      %36 = vector.load %arg4[%c0_18, %c0_19, %c0_20] : memref<1x8x128xf32, #tpu.memory_space<vmem>>, vector<1x8x128xf32>
      tpu.vector_store %arg4[%c0_18, %c0_19, %c0_20], %35 {strides = array<i32>} : memref<1x8x128xf32, #tpu.memory_space<vmem>>, vector<1x8x128xf32>,
    } else {
    }
    %c0 = arith.constant 0 : index
    %c0_1 = arith.constant 0 : index
    %3 = vector.load %arg2[%c0, %c0_1] : memref<16x128xf32, #tpu.memory_space<vmem>>, vector<16x128xf32>
    %c0_2 = arith.constant 0 : index
    %c0_3 = arith.constant 0 : index
    %4 = vector.load %arg3[%c0_2, %c0_3] : memref<16x128xf32, #tpu.memory_space<vmem>>, vector<16x128xf32>
    %5 = math.log %3 : vector<16x128xf32>
    %cst = arith.constant -1.000000e+02 : f32
    %6 = vector.broadcast %cst : f32 to vector<16x128xf32>
    %7 = arith.maximumf %5, %6 : vector<16x128xf32>
    %cst_4 = arith.constant 0.000000e+00 : f32
    %8 = vector.broadcast %cst_4 : f32 to vector<16x128xf32>
    %9 = arith.subf %8, %3 : vector<16x128xf32>
    %10 = math.log1p %9 : vector<16x128xf32>
    %cst_5 = arith.constant -1.000000e+02 : f32
    %11 = vector.broadcast %cst_5 : f32 to vector<16x128xf32>
    %12 = arith.maximumf %10, %11 : vector<16x128xf32>
    %13 = arith.mulf %4, %7 : vector<16x128xf32>
    %cst_6 = arith.constant 1.000000e+00 : f32
    %14 = vector.broadcast %cst_6 : f32 to vector<16x128xf32>
    %15 = arith.subf %14, %4 : vector<16x128xf32>
    %16 = arith.mulf %15, %12 : vector<16x128xf32>
    %17 = arith.addf %13, %16 : vector<16x128xf32>
    %cst_7 = arith.constant 0.000000e+00 : f32
    %18 = vector.broadcast %cst_7 : f32 to vector<16x128xf32>
    %19 = arith.subf %18, %17 : vector<16x128xf32>
    %cst_8 = arith.constant 0.000000e+00 : f32
    %20 = vector.broadcast %cst_8 : f32 to vector<16x128xf32>
    %21 = arith.subf %20, %19 : vector<16x128xf32>
    %22 = math.exp %21 : vector<16x128xf32>
    %cst_9 = arith.constant 1.000000e+00 : f32
    %23 = vector.broadcast %cst_9 : f32 to vector<16x128xf32>
    %24 = arith.subf %23, %22 : vector<16x128xf32>
    %25 = arith.mulf %24, %24 : vector<16x128xf32>
    %26 = arith.mulf %25, %19 : vector<16x128xf32>
    %c0_10 = arith.constant 0 : index
    %c0_11 = arith.constant 0 : index
    %c0_12 = arith.constant 0 : index
    %27 = vector.load %arg4[%c0_10, %c0_11, %c0_12] : memref<1x8x128xf32, #tpu.memory_space<vmem>>, vector<1x8x128xf32>
    %28 = vector.shape_cast %27 : vector<1x8x128xf32> to vector<8x128xf32>
    %29 = vector.shape_cast %26 : vector<16x128xf32> to vector<2x8x128xf32>
    %cst_13 = arith.constant dense<0.000000e+00> : vector<8x128xf32>
    %30 = vector.multi_reduction <add>, %29, %cst_13 [0] : vector<2x8x128xf32> to vector<8x128xf32>
    %31 = arith.addf %28, %30 : vector<8x128xf32>
    %c0_14 = arith.constant 0 : index
    %c0_15 = arith.constant 0 : index
    %c0_16 = arith.constant 0 : index
    %32 = vector.load %arg4[%c0_14, %c0_15, %c0_16] : memref<1x8x128xf32, #tpu.memory_space<vmem>>, vector<1x8x128xf32>
    %33 = vector.shape_cast %32 : vector<1x8x128xf32> to vector<8x128xf32>
    %34 = vector.shape_cast %31 : vector<8x128xf32> to vector<1x8x128xf32>
    tpu.vector_store %arg4[%c0_14, %c0_15, %c0_16], %34 {strides = array<i32>} : memref<1x8x128xf32, #tpu.memory_space<vmem>>, vector<1x8x128xf32>,
    return
  }
  func.func @transform_0(%arg0: i32, %arg1: i32) -> (i32, i32) {
    %c1_i32 = arith.constant 1 : i32
    %0 = arith.muli %arg0, %c1_i32 : i32
    %1 = arith.addi %0, %arg1 : i32
    %c0_i32 = arith.constant 0 : i32
    %2 = arith.minsi %1, %c0_i32 : i32
    %c0_i32_0 = arith.constant 0 : i32
    %c0_i32_1 = arith.constant 0 : i32
    return %2, %c0_i32_0 : i32, i32
  }
  func.func @transform_1(%arg0: i32, %arg1: i32) -> (i32, i32) {
    %c1_i32 = arith.constant 1 : i32
    %0 = arith.muli %arg0, %c1_i32 : i32
    %1 = arith.addi %0, %arg1 : i32
    %c0_i32 = arith.constant 0 : i32
    %2 = arith.minsi %1, %c0_i32 : i32
    %c0_i32_0 = arith.constant 0 : i32
    %c0_i32_1 = arith.constant 0 : i32
    return %2, %c0_i32_0 : i32, i32
  }
  func.func @transform_2(%arg0: i32, %arg1: i32) -> (i32, i32, i32) {
    %c0_i32 = arith.constant 0 : i32
    %c0_i32_0 = arith.constant 0 : i32
    %c0_i32_1 = arith.constant 0 : i32
    return %arg0, %c0_i32, %c0_i32_0 : i32, i32, i32
  }
}

</mosaic_0001>

<llo_original>
// kernel: tpu_custom_call.1
$region0: #{tpu_custom_call.1}
  #allocation0 [shape = 'u32[]', space=smem, size = 0x4, offset = 0x4, fixed_abs, tag = 'smem constant byte address 0x4 - core index']
  #allocation1 [shape = 'u32[144,128]{1,0:T(1,128)}', space=vmem, size = 0x12000, scoped, tag = 'internal scratch']
  %s0 = inlined_call_operand.hbm [shape: f32[16,128], index: 0, kind: input, shape index: {}]
  %s1 = inlined_call_operand.hbm [shape: f32[16,128], index: 1, kind: input, shape index: {}]
  %s2 = inlined_call_operand.hbm [shape: f32[1,8,128], index: 2, kind: output, shape index: {}]
  %s3 = sld [smem:[#allocation0]]
  $region30: #{tpu_custom_call.1} parent=0
    _
  %s5 = ssub.s32 1, %s3
  %s6 = scalar_select 0, %s5, %s3
  $region1: #{tpu_custom_call.1} parent=0
    #allocation2 [shape = 'u8[8192]{0}', space=vmem, size = 0x2000, scoped, tag = 'input window, operand 0, single buffered']
    #allocation3 [shape = 's32[1]{0}', space=sflag, size = 0x4, scoped, tag = 'scoped memory for tpu_custom_call.1']
    #allocation4 [shape = 's32[1]{0}', space=sflag, size = 0x4, scoped, tag = 'scoped memory for tpu_custom_call.1']
    #allocation5 [shape = 'u8[8192]{0}', space=vmem, size = 0x2000, scoped, tag = 'input window, operand 1, single buffered']
    #allocation6 [shape = 's32[1]{0}', space=sflag, size = 0x4, scoped, tag = 'scoped memory for tpu_custom_call.1']
    #allocation7 [shape = 'u8[4096]{0}', space=vmem, size = 0x1000, scoped, tag = 'output window, operand 0, single buffered']
    %7 = vsyncpa [#allocation3], 0
    %8 = vsyncpa [#allocation6], 0
    %9 = vsyncpa [#allocation4], 0
    // Predicated region
    $region2: #{tpu_custom_call.1} parent=1 // pred_check
      _
    $region3: #{tpu_custom_call.1} parent=1 // pred_check_branch
      %11 = sbr.rel (0) target = $region5
    $region4: #{tpu_custom_call.1} parent=1 // pred_region
      %s12 = sadd.s32 0, 0
      %p13 = scmp.lt.s32.totalorder %s12, 0
      %s14 = scalar_select %p13, %s12, 0
      %s15 = smul.u32 2, %s14
      %s17 = ssub.s32 256, 256
      %18 = vsyncadd [#allocation3], %s17
      %s19 = smul.addr %s15, 128
      %s20 = scalar_lea.hbm %s0, %s19
      %s21 = sshll.u32 [#allocation2], 4
      %s22 = int_to_ptr.vmem [resolvable:$true] %s21
      %27 = dma.hbm_to_vmem [thread:$0]  %s20, 256, %s22, [#allocation3], 128, 128, 8
    $region5: #{tpu_custom_call.1} parent=1 // pred_fallthru
      _
    // Predicated region
    $region6: #{tpu_custom_call.1} parent=1 // pred_check
      _
    $region7: #{tpu_custom_call.1} parent=1 // pred_check_branch
      %29 = sbr.rel (0) target = $region9
    $region8: #{tpu_custom_call.1} parent=1 // pred_region
      %s30 = sadd.s32 0, 0
      %p31 = scmp.lt.s32.totalorder %s30, 0
      %s32 = scalar_select %p31, %s30, 0
      %s33 = smul.u32 2, %s32
      %s35 = ssub.s32 256, 256
      %36 = vsyncadd [#allocation6], %s35
      %s37 = smul.addr %s33, 128
      %s38 = scalar_lea.hbm %s1, %s37
      %s39 = sshll.u32 [#allocation5], 4
      %s40 = int_to_ptr.vmem [resolvable:$true] %s39
      %45 = dma.hbm_to_vmem [thread:$0]  %s38, 256, %s40, [#allocation6], 128, 128, 8
    $region9: #{tpu_custom_call.1} parent=1 // pred_fallthru
      _
    // Predicated region
    $region10: #{tpu_custom_call.1} parent=1 // pred_check
      _
    $region11: #{tpu_custom_call.1} parent=1 // pred_check_branch
      %47 = sbr.rel (0) target = $region13
    $region12: #{tpu_custom_call.1} parent=1 // pred_region
      %48 = dma.done [#allocation3], 256
    $region13: #{tpu_custom_call.1} parent=1 // pred_fallthru
      _
    // Predicated region
    $region14: #{tpu_custom_call.1} parent=1 // pred_check
      _
    $region15: #{tpu_custom_call.1} parent=1 // pred_check_branch
      %50 = sbr.rel (0) target = $region17
    $region16: #{tpu_custom_call.1} parent=1 // pred_region
      %51 = dma.done [#allocation6], 256
    $region17: #{tpu_custom_call.1} parent=1 // pred_fallthru
      _
    %s52 = sadd.s32 0, 0
    %p53 = scmp.lt.s32.totalorder %s52, 0
    %s54 = scalar_select %p53, %s52, 0
    %s55 = smul.u32 2, %s54
    %s56 = sadd.s32 0, 0
    %p57 = scmp.lt.s32.totalorder %s56, 0
    %s58 = scalar_select %p57, %s56, 0
    %s59 = smul.u32 2, %s58
    %p60 = scmp.eq.s32.totalorder 0, 0
    // Predicated region
    $region18: #{tpu_custom_call.1} parent=1 // pred_check
      %p61 = pneg %p60
    $region19: #{tpu_custom_call.1} parent=1 // pred_check_branch
      %63 = sbr.rel (%p61) target = $region21
    $region20: #{tpu_custom_call.1} parent=1 // pred_region
      %64 = vst [vmem:[#allocation7] sm:$0xff] 0.0
    $region21: #{tpu_custom_call.1} parent=1 // pred_fallthru
      _
    %v65 = vld [vmem:[#allocation2] sm:$0xff]
    %v66 = vld [vmem:[#allocation2 + $0x8] sm:$0xff]
    %v67 = vld [vmem:[#allocation5] sm:$0xff]
    %v68 = vld [vmem:[#allocation5 + $0x8] sm:$0xff]
    %v69 = vlog2.pop %v65
    %v70 = vmul.f32 %v69, 0.6931472
    %v71 = vlog2.pop %v66
    %v72 = vmul.f32 %v71, 0.6931472
    %v73 = vmax.f32 %v70, -100.0
    %v74 = vmax.f32 %v72, -100.0
    %v75 = vsub.f32 0.0, %v65
    %v76 = vsub.f32 0.0, %v66
    %v77 = vadd.f32 %v75, 1.0
    %v78 = vlog2.pop %v77
    %v79 = vmul.f32 %v78, 0.6931472
    %v80 = vmul.f32 -0.5, %v75
    %v81 = vadd.f32 %v80, 1.0
    %v82 = vmul.f32 %v81, %v75
    %v83 = vand.u32 2147483647, %v75
    %vm84 = vcmp.lt.f32.partialorder %v83, 0.0004427343
    %v85 = vsel %vm84, %v82, %v79
    %v86 = vadd.f32 %v76, 1.0
    %v87 = vlog2.pop %v86
    %v88 = vmul.f32 %v87, 0.6931472
    %v89 = vmul.f32 -0.5, %v76
    %v90 = vadd.f32 %v89, 1.0
    %v91 = vmul.f32 %v90, %v76
    %v92 = vand.u32 2147483647, %v76
    %vm93 = vcmp.lt.f32.partialorder %v92, 0.0004427343
    %v94 = vsel %vm93, %v91, %v88
    %v95 = vmax.f32 %v85, -100.0
    %v96 = vmax.f32 %v94, -100.0
    %v97 = vmul.f32 %v67, %v73
    %v98 = vmul.f32 %v68, %v74
    %v99 = vsub.f32 1.0, %v67
    %v100 = vsub.f32 1.0, %v68
    %v101 = vmul.f32 %v99, %v95
    %v102 = vmul.f32 %v100, %v96
    %v103 = vadd.f32 %v97, %v101
    %v104 = vadd.f32 %v98, %v102
    %v105 = vsub.f32 0.0, %v103
    %v106 = vsub.f32 0.0, %v104
    %v107 = vsub.f32 0.0, %v105
    %v108 = vsub.f32 0.0, %v106
    %v109 = vmul.f32 %v107, 1.442695
    %v110 = vpow.pop %v109
    %v111 = vmul.f32 %v108, 1.442695
    %v112 = vpow.pop %v111
    %v113 = vsub.f32 1.0, %v110
    %v114 = vsub.f32 1.0, %v112
    %v115 = vmul.f32 %v113, %v113
    %v116 = vmul.f32 %v114, %v114
    %v117 = vmul.f32 %v115, %v105
    %v118 = vmul.f32 %v116, %v106
    %v119 = vld [vmem:[#allocation7] sm:$0xff]
    %v120 = vadd.f32 %v117, %v118
    %v121 = vadd.f32 %v119, %v120
    %122 = vst [vmem:[#allocation7] sm:$0xff] %v121
    // Predicated region
    $region22: #{tpu_custom_call.1} parent=1 // pred_check
      _
    $region23: #{tpu_custom_call.1} parent=1 // pred_check_branch
      %124 = sbr.rel (0) target = $region25
    $region24: #{tpu_custom_call.1} parent=1 // pred_region
      %s126 = ssub.s32 128, 128
      %127 = vsyncadd [#allocation4], %s126
      %s129 = sshll.u32 [#allocation7], 4
      %s130 = int_to_ptr.vmem [resolvable:$true] %s129
      %132 = dma.vmem_to_hbm [thread:$0]  %s130, 128, %s2, [#allocation4]
    $region25: #{tpu_custom_call.1} parent=1 // pred_fallthru
      _
    // Predicated region
    $region26: #{tpu_custom_call.1} parent=1 // pred_check
      _
    $region27: #{tpu_custom_call.1} parent=1 // pred_check_branch
      %134 = sbr.rel (0) target = $region29
    $region28: #{tpu_custom_call.1} parent=1 // pred_region
      %135 = dma.done [#allocation4], 128
    $region29: #{tpu_custom_call.1} parent=1 // pred_fallthru
      _
    %136 = vsyncpa [#allocation3], 1
    %137 = vsyncpa [#allocation6], 1
    %138 = vsyncpa [#allocation4], 1

</llo_original>
